<compile_context>
chip_gen: v5e
topology: v5e:2x2
jax: 0.10.0
libtpu: 0.0.40
codegen_flags: <defaults>
</compile_context>

<pallas_src>
import jax
import jax.numpy as jnp
from jax.experimental import pallas as pl
from jax.experimental.pallas import tpu as pltpu

HIDDEN = 4    # fixed by the module: nn.Linear(embedding_dim, 4)
LANES = 128   # TPU vreg lane width


def _pick_row_tile(n):
    """Largest multiple-of-8 tile (<=256) dividing n, else full n (full-dim block)."""
    for t in (256, 128, 64, 32, 16, 8):
        if n % t == 0:
            return t
    return n


def quantile_net_kernel(state_ref, w1_ref, b1_ref, tau_ref, w2p_ref, b2p_ref,
                        out_ref):
    """One (batch b, N-tile) grid step.

    state_ref: (B, E)      f32, SMEM (scalar reads)
    w1_ref:    (E, H)      f32, SMEM (scalar reads)
    b1_ref:    (H,)        f32, SMEM
    tau_ref:   (1, TN, E)  f32, VMEM tile
    w2p_ref:   (H, AP)     f32, VMEM (A zero-padded to 128 lanes)
    b2p_ref:   (1, AP)     f32, VMEM
    out_ref:   (1, TN, AP) f32, VMEM tile (lane-dense)
    """
    b = pl.program_id(0)
    tn, e_dim = tau_ref.shape[1], tau_ref.shape[2]
    h_dim = w1_ref.shape[1]
    ap = out_ref.shape[2]

    tau = tau_ref[0]                                        # (TN, E)

    # Lane-dense accumulator for the second linear, initialised with its bias.
    q = jnp.broadcast_to(b2p_ref[...], (tn, ap)).astype(jnp.float32)

    # Unrolled VPU-FMA formulation (E, H tiny; MXU deliberately not used).
    # TODO(synk): for large E (>=128), move w1 into a VMEM tile and use a
    # vectorized bf16 MXU dot instead of the scalar-unrolled loop below.
    for j in range(h_dim):
        acc = jnp.full((tn, 1), b1_ref[j], dtype=jnp.float32)
        for e in range(e_dim):
            c = state_ref[b, e] * w1_ref[e, j]              # scalar (SMEM)
            acc = acc + c * tau[:, e:e + 1]                 # (TN, 1) FMA
        h_j = jnp.maximum(acc, 0.0)                         # ReLU, (TN, 1)
        q = q + h_j * w2p_ref[j:j + 1, :]                   # (TN, AP) FMA
    out_ref[0] = q.astype(out_ref.dtype)


def quantile_net_forward(state_embeddings, tau_embeddings, w1, b1, w2, b2):
    B, E = state_embeddings.shape
    _, N, _ = tau_embeddings.shape
    H = w1.shape[1]
    A = w2.shape[1]
    AP = ((A + LANES - 1) // LANES) * LANES                 # pad actions to 128

    # Zero-pad second-layer params so kernel stores are full-lane (unmasked).
    w2p = jnp.zeros((H, AP), jnp.float32).at[:, :A].set(w2.astype(jnp.float32))
    b2p = jnp.zeros((1, AP), jnp.float32).at[0, :A].set(b2.astype(jnp.float32))

    TN = _pick_row_tile(N)
    grid = (B, N // TN)

    smem = pl.BlockSpec(memory_space=pltpu.MemorySpace.SMEM)
    vmem = pl.BlockSpec(memory_space=pltpu.MemorySpace.VMEM)

    flops = B * N * E + 2 * B * N * E * H + 2 * B * N * H * A
    bytes_accessed = 4 * (B * E + E * H + H + B * N * E + H * AP + AP
                          + B * N * AP)

    out_padded = pl.pallas_call(
        quantile_net_kernel,
        out_shape=jax.ShapeDtypeStruct((B, N, AP), jnp.float32),
        grid=grid,
        in_specs=[
            smem,                                            # state (B, E)
            smem,                                            # w1 (E, H)
            smem,                                            # b1 (H,)
            pl.BlockSpec((1, TN, E), lambda b, n: (b, n, 0)),  # tau tile
            vmem,                                            # w2 padded
            vmem,                                            # b2 padded
        ],
        out_specs=pl.BlockSpec((1, TN, AP), lambda b, n: (b, n, 0)),
        compiler_params=pltpu.CompilerParams(
            dimension_semantics=("parallel", "parallel")),
        cost_estimate=pl.CostEstimate(flops=flops, transcendentals=0,
                                      bytes_accessed=bytes_accessed),
    )(state_embeddings.astype(jnp.float32), w1.astype(jnp.float32),
      b1.astype(jnp.float32), tau_embeddings.astype(jnp.float32), w2p, b2p)

    # Layout plumbing back to the module's contract happens in the wrapper.
    return out_padded[..., :A]


def reference_forward(state_embeddings, tau_embeddings, w1, b1, w2, b2):
    B, E = state_embeddings.shape
    _, N, _ = tau_embeddings.shape
    emb = (state_embeddings[:, None, :] * tau_embeddings).reshape(B * N, E)
    h = jnp.maximum(emb @ w1 + b1, 0.0)
    q = h @ w2 + b2
    return q.reshape(B, N, -1)


if __name__ == "__main__":
    # Small shapes consistent with the module's forward contract.
    batch = 2
    N = 8
    embedding_dim = 8
    num_actions = 4

    key = jax.random.PRNGKey(0)
    k_state, k_tau, k_w1, k_b1, k_w2, k_b2 = jax.random.split(key, 6)

    state_embeddings = jax.random.normal(
        k_state, (batch, embedding_dim), dtype=jnp.float32)
    tau_embeddings = jax.random.normal(
        k_tau, (batch, N, embedding_dim), dtype=jnp.float32)

    # Parameters stored transposed vs. PyTorch (in_features, out_features);
    # biases 1-D as in nn.Linear.
    w1 = jax.random.normal(k_w1, (embedding_dim, HIDDEN), jnp.float32) * 0.5
    b1 = jax.random.normal(k_b1, (HIDDEN,), jnp.float32) * 0.1
    w2 = jax.random.normal(k_w2, (HIDDEN, num_actions), jnp.float32) * 0.5
    b2 = jax.random.normal(k_b2, (num_actions,), jnp.float32) * 0.1

    out = quantile_net_forward(state_embeddings, tau_embeddings, w1, b1, w2, b2)
    out = jax.block_until_ready(out)

    ref = reference_forward(state_embeddings, tau_embeddings, w1, b1, w2, b2)
    assert out.shape == (batch, N, num_actions)
    assert jnp.allclose(out, ref, atol=1e-5, rtol=1e-5), "mismatch vs reference"

    print("KERNEL_OK")
</pallas_src>

<mosaic_0001>
module attributes {stable_mosaic.version = 11 : i64} {
  func.func @quantile_net_kernel(%arg0: i32, %arg1: i32, %arg2: memref<2x8xf32, #tpu.memory_space<smem>>, %arg3: memref<8x4xf32, #tpu.memory_space<smem>>, %arg4: memref<4xf32, #tpu.memory_space<smem>>, %arg5: memref<1x8x8xf32, #tpu.memory_space<vmem>>, %arg6: memref<4x128xf32, #tpu.memory_space<vmem>>, %arg7: memref<1x128xf32, #tpu.memory_space<vmem>>, %arg8: memref<1x8x128xf32, #tpu.memory_space<vmem>>) attributes {dimension_semantics = [#tpu.dimension_semantics<parallel>, #tpu.dimension_semantics<parallel>], iteration_bounds = array<i64: 2, 1>, scalar_prefetch = 0 : i64, scratch_operands = 0 : i64, tpu.core_type = #tpu.core_type<tc>, window_params = [{transform_indices = @transform_0, window_bounds = array<i64: 2, 8>}, {transform_indices = @transform_1, window_bounds = array<i64: 8, 4>}, {transform_indices = @transform_2, window_bounds = array<i64: 4>}, {transform_indices = @transform_3, window_bounds = array<i64: 1, 8, 8>}, {pipeline_mode = #tpu.pipeline_mode<synchronous>, transform_indices = @transform_4, window_bounds = array<i64: 4, 128>}, {pipeline_mode = #tpu.pipeline_mode<synchronous>, transform_indices = @transform_5, window_bounds = array<i64: 1, 128>}, {transform_indices = @transform_6, window_bounds = array<i64: 1, 8, 128>}]} {
    %c0 = arith.constant 0 : index
    %c0_0 = arith.constant 0 : index
    %c0_1 = arith.constant 0 : index
    %0 = vector.load %arg5[%c0, %c0_0, %c0_1] : memref<1x8x8xf32, #tpu.memory_space<vmem>>, vector<1x8x8xf32>
    %1 = vector.shape_cast %0 : vector<1x8x8xf32> to vector<8x8xf32>
    %c0_2 = arith.constant 0 : index
    %c0_3 = arith.constant 0 : index
    %2 = vector.load %arg7[%c0_2, %c0_3] : memref<1x128xf32, #tpu.memory_space<vmem>>, vector<1x128xf32>
    %3 = vector.shape_cast %2 : vector<1x128xf32> to vector<1x128xf32>
    %4 = vector.broadcast %3 : vector<1x128xf32> to vector<8x128xf32>
    %c0_4 = arith.constant 0 : index
    %5 = memref.load %arg4[%c0_4] : memref<4xf32, #tpu.memory_space<smem>>
    %6 = vector.broadcast %5 : f32 to vector<8x1xf32>
    %7 = arith.index_cast %arg0 : i32 to index
    %c0_5 = arith.constant 0 : index
    %8 = memref.load %arg2[%7, %c0_5] : memref<2x8xf32, #tpu.memory_space<smem>>
    %c0_6 = arith.constant 0 : index
    %c0_7 = arith.constant 0 : index
    %9 = memref.load %arg3[%c0_6, %c0_7] : memref<8x4xf32, #tpu.memory_space<smem>>
    %10 = arith.mulf %8, %9 : f32
    %11 = vector.extract_strided_slice %1 {offsets = [0, 0], sizes = [8, 1], strides = [1, 1]} : vector<8x8xf32> to vector<8x1xf32>
    %12 = vector.broadcast %10 : f32 to vector<8x1xf32>
    %13 = arith.mulf %12, %11 : vector<8x1xf32>
    %14 = arith.addf %6, %13 : vector<8x1xf32>
    %15 = arith.index_cast %arg0 : i32 to index
    %c1 = arith.constant 1 : index
    %16 = memref.load %arg2[%15, %c1] : memref<2x8xf32, #tpu.memory_space<smem>>
    %c1_8 = arith.constant 1 : index
    %c0_9 = arith.constant 0 : index
    %17 = memref.load %arg3[%c1_8, %c0_9] : memref<8x4xf32, #tpu.memory_space<smem>>
    %18 = arith.mulf %16, %17 : f32
    %19 = vector.extract_strided_slice %1 {offsets = [0, 1], sizes = [8, 1], strides = [1, 1]} : vector<8x8xf32> to vector<8x1xf32>
    %20 = vector.broadcast %18 : f32 to vector<8x1xf32>
    %21 = arith.mulf %20, %19 : vector<8x1xf32>
    %22 = arith.addf %14, %21 : vector<8x1xf32>
    %23 = arith.index_cast %arg0 : i32 to index
    %c2 = arith.constant 2 : index
    %24 = memref.load %arg2[%23, %c2] : memref<2x8xf32, #tpu.memory_space<smem>>
    %c2_10 = arith.constant 2 : index
    %c0_11 = arith.constant 0 : index
    %25 = memref.load %arg3[%c2_10, %c0_11] : memref<8x4xf32, #tpu.memory_space<smem>>
    %26 = arith.mulf %24, %25 : f32
    %27 = vector.extract_strided_slice %1 {offsets = [0, 2], sizes = [8, 1], strides = [1, 1]} : vector<8x8xf32> to vector<8x1xf32>
    %28 = vector.broadcast %26 : f32 to vector<8x1xf32>
    %29 = arith.mulf %28, %27 : vector<8x1xf32>
    %30 = arith.addf %22, %29 : vector<8x1xf32>
    %31 = arith.index_cast %arg0 : i32 to index
    %c3 = arith.constant 3 : index
    %32 = memref.load %arg2[%31, %c3] : memref<2x8xf32, #tpu.memory_space<smem>>
    %c3_12 = arith.constant 3 : index
    %c0_13 = arith.constant 0 : index
    %33 = memref.load %arg3[%c3_12, %c0_13] : memref<8x4xf32, #tpu.memory_space<smem>>
    %34 = arith.mulf %32, %33 : f32
    %35 = vector.extract_strided_slice %1 {offsets = [0, 3], sizes = [8, 1], strides = [1, 1]} : vector<8x8xf32> to vector<8x1xf32>
    %36 = vector.broadcast %34 : f32 to vector<8x1xf32>
    %37 = arith.mulf %36, %35 : vector<8x1xf32>
    %38 = arith.addf %30, %37 : vector<8x1xf32>
    %39 = arith.index_cast %arg0 : i32 to index
    %c4 = arith.constant 4 : index
    %40 = memref.load %arg2[%39, %c4] : memref<2x8xf32, #tpu.memory_space<smem>>
    %c4_14 = arith.constant 4 : index
    %c0_15 = arith.constant 0 : index
    %41 = memref.load %arg3[%c4_14, %c0_15] : memref<8x4xf32, #tpu.memory_space<smem>>
    %42 = arith.mulf %40, %41 : f32
    %43 = vector.extract_strided_slice %1 {offsets = [0, 4], sizes = [8, 1], strides = [1, 1]} : vector<8x8xf32> to vector<8x1xf32>
    %44 = vector.broadcast %42 : f32 to vector<8x1xf32>
    %45 = arith.mulf %44, %43 : vector<8x1xf32>
    %46 = arith.addf %38, %45 : vector<8x1xf32>
    %47 = arith.index_cast %arg0 : i32 to index
    %c5 = arith.constant 5 : index
    %48 = memref.load %arg2[%47, %c5] : memref<2x8xf32, #tpu.memory_space<smem>>
    %c5_16 = arith.constant 5 : index
    %c0_17 = arith.constant 0 : index
    %49 = memref.load %arg3[%c5_16, %c0_17] : memref<8x4xf32, #tpu.memory_space<smem>>
    %50 = arith.mulf %48, %49 : f32
    %51 = vector.extract_strided_slice %1 {offsets = [0, 5], sizes = [8, 1], strides = [1, 1]} : vector<8x8xf32> to vector<8x1xf32>
    %52 = vector.broadcast %50 : f32 to vector<8x1xf32>
    %53 = arith.mulf %52, %51 : vector<8x1xf32>
    %54 = arith.addf %46, %53 : vector<8x1xf32>
    %55 = arith.index_cast %arg0 : i32 to index
    %c6 = arith.constant 6 : index
    %56 = memref.load %arg2[%55, %c6] : memref<2x8xf32, #tpu.memory_space<smem>>
    %c6_18 = arith.constant 6 : index
    %c0_19 = arith.constant 0 : index
    %57 = memref.load %arg3[%c6_18, %c0_19] : memref<8x4xf32, #tpu.memory_space<smem>>
    %58 = arith.mulf %56, %57 : f32
    %59 = vector.extract_strided_slice %1 {offsets = [0, 6], sizes = [8, 1], strides = [1, 1]} : vector<8x8xf32> to vector<8x1xf32>
    %60 = vector.broadcast %58 : f32 to vector<8x1xf32>
    %61 = arith.mulf %60, %59 : vector<8x1xf32>
    %62 = arith.addf %54, %61 : vector<8x1xf32>
    %63 = arith.index_cast %arg0 : i32 to index
    %c7 = arith.constant 7 : index
    %64 = memref.load %arg2[%63, %c7] : memref<2x8xf32, #tpu.memory_space<smem>>
    %c7_20 = arith.constant 7 : index
    %c0_21 = arith.constant 0 : index
    %65 = memref.load %arg3[%c7_20, %c0_21] : memref<8x4xf32, #tpu.memory_space<smem>>
    %66 = arith.mulf %64, %65 : f32
    %67 = vector.extract_strided_slice %1 {offsets = [0, 7], sizes = [8, 1], strides = [1, 1]} : vector<8x8xf32> to vector<8x1xf32>
    %68 = vector.broadcast %66 : f32 to vector<8x1xf32>
    %69 = arith.mulf %68, %67 : vector<8x1xf32>
    %70 = arith.addf %62, %69 : vector<8x1xf32>
    %cst = arith.constant 0.000000e+00 : f32
    %71 = vector.broadcast %cst : f32 to vector<8x1xf32>
    %72 = arith.maximumf %70, %71 : vector<8x1xf32>
    %c0_22 = arith.constant 0 : index
    %c0_23 = arith.constant 0 : index
    %73 = vector.load %arg6[%c0_22, %c0_23] : memref<4x128xf32, #tpu.memory_space<vmem>>, vector<1x128xf32>
    %74 = vector.broadcast %72 : vector<8x1xf32> to vector<8x128xf32>
    %75 = vector.broadcast %73 : vector<1x128xf32> to vector<8x128xf32>
    %76 = arith.mulf %74, %75 : vector<8x128xf32>
    %77 = arith.addf %4, %76 : vector<8x128xf32>
    %c1_24 = arith.constant 1 : index
    %78 = memref.load %arg4[%c1_24] : memref<4xf32, #tpu.memory_space<smem>>
    %79 = vector.broadcast %78 : f32 to vector<8x1xf32>
    %80 = arith.index_cast %arg0 : i32 to index
    %c0_25 = arith.constant 0 : index
    %81 = memref.load %arg2[%80, %c0_25] : memref<2x8xf32, #tpu.memory_space<smem>>
    %c0_26 = arith.constant 0 : index
    %c1_27 = arith.constant 1 : index
    %82 = memref.load %arg3[%c0_26, %c1_27] : memref<8x4xf32, #tpu.memory_space<smem>>
    %83 = arith.mulf %81, %82 : f32
    %84 = vector.extract_strided_slice %1 {offsets = [0, 0], sizes = [8, 1], strides = [1, 1]} : vector<8x8xf32> to vector<8x1xf32>
    %85 = vector.broadcast %83 : f32 to vector<8x1xf32>
    %86 = arith.mulf %85, %84 : vector<8x1xf32>
    %87 = arith.addf %79, %86 : vector<8x1xf32>
    %88 = arith.index_cast %arg0 : i32 to index
    %c1_28 = arith.constant 1 : index
    %89 = memref.load %arg2[%88, %c1_28] : memref<2x8xf32, #tpu.memory_space<smem>>
    %c1_29 = arith.constant 1 : index
    %c1_30 = arith.constant 1 : index
    %90 = memref.load %arg3[%c1_29, %c1_30] : memref<8x4xf32, #tpu.memory_space<smem>>
    %91 = arith.mulf %89, %90 : f32
    %92 = vector.extract_strided_slice %1 {offsets = [0, 1], sizes = [8, 1], strides = [1, 1]} : vector<8x8xf32> to vector<8x1xf32>
    %93 = vector.broadcast %91 : f32 to vector<8x1xf32>
    %94 = arith.mulf %93, %92 : vector<8x1xf32>
    %95 = arith.addf %87, %94 : vector<8x1xf32>
    %96 = arith.index_cast %arg0 : i32 to index
    %c2_31 = arith.constant 2 : index
    %97 = memref.load %arg2[%96, %c2_31] : memref<2x8xf32, #tpu.memory_space<smem>>
    %c2_32 = arith.constant 2 : index
    %c1_33 = arith.constant 1 : index
    %98 = memref.load %arg3[%c2_32, %c1_33] : memref<8x4xf32, #tpu.memory_space<smem>>
    %99 = arith.mulf %97, %98 : f32
    %100 = vector.extract_strided_slice %1 {offsets = [0, 2], sizes = [8, 1], strides = [1, 1]} : vector<8x8xf32> to vector<8x1xf32>
    %101 = vector.broadcast %99 : f32 to vector<8x1xf32>
    %102 = arith.mulf %101, %100 : vector<8x1xf32>
    %103 = arith.addf %95, %102 : vector<8x1xf32>
    %104 = arith.index_cast %arg0 : i32 to index
    %c3_34 = arith.constant 3 : index
    %105 = memref.load %arg2[%104, %c3_34] : memref<2x8xf32, #tpu.memory_space<smem>>
    %c3_35 = arith.constant 3 : index
    %c1_36 = arith.constant 1 : index
    %106 = memref.load %arg3[%c3_35, %c1_36] : memref<8x4xf32, #tpu.memory_space<smem>>
    %107 = arith.mulf %105, %106 : f32
    %108 = vector.extract_strided_slice %1 {offsets = [0, 3], sizes = [8, 1], strides = [1, 1]} : vector<8x8xf32> to vector<8x1xf32>
    %109 = vector.broadcast %107 : f32 to vector<8x1xf32>
    %110 = arith.mulf %109, %108 : vector<8x1xf32>
    %111 = arith.addf %103, %110 : vector<8x1xf32>
    %112 = arith.index_cast %arg0 : i32 to index
    %c4_37 = arith.constant 4 : index
    %113 = memref.load %arg2[%112, %c4_37] : memref<2x8xf32, #tpu.memory_space<smem>>
    %c4_38 = arith.constant 4 : index
    %c1_39 = arith.constant 1 : index
    %114 = memref.load %arg3[%c4_38, %c1_39] : memref<8x4xf32, #tpu.memory_space<smem>>
    %115 = arith.mulf %113, %114 : f32
    %116 = vector.extract_strided_slice %1 {offsets = [0, 4], sizes = [8, 1], strides = [1, 1]} : vector<8x8xf32> to vector<8x1xf32>
    %117 = vector.broadcast %115 : f32 to vector<8x1xf32>
    %118 = arith.mulf %117, %116 : vector<8x1xf32>
    %119 = arith.addf %111, %118 : vector<8x1xf32>
    %120 = arith.index_cast %arg0 : i32 to index
    %c5_40 = arith.constant 5 : index
    %121 = memref.load %arg2[%120, %c5_40] : memref<2x8xf32, #tpu.memory_space<smem>>
    %c5_41 = arith.constant 5 : index
    %c1_42 = arith.constant 1 : index
    %122 = memref.load %arg3[%c5_41, %c1_42] : memref<8x4xf32, #tpu.memory_space<smem>>
    %123 = arith.mulf %121, %122 : f32
    %124 = vector.extract_strided_slice %1 {offsets = [0, 5], sizes = [8, 1], strides = [1, 1]} : vector<8x8xf32> to vector<8x1xf32>
    %125 = vector.broadcast %123 : f32 to vector<8x1xf32>
    %126 = arith.mulf %125, %124 : vector<8x1xf32>
    %127 = arith.addf %119, %126 : vector<8x1xf32>
    %128 = arith.index_cast %arg0 : i32 to index
    %c6_43 = arith.constant 6 : index
    %129 = memref.load %arg2[%128, %c6_43] : memref<2x8xf32, #tpu.memory_space<smem>>
    %c6_44 = arith.constant 6 : index
    %c1_45 = arith.constant 1 : index
    %130 = memref.load %arg3[%c6_44, %c1_45] : memref<8x4xf32, #tpu.memory_space<smem>>
    %131 = arith.mulf %129, %130 : f32
    %132 = vector.extract_strided_slice %1 {offsets = [0, 6], sizes = [8, 1], strides = [1, 1]} : vector<8x8xf32> to vector<8x1xf32>
    %133 = vector.broadcast %131 : f32 to vector<8x1xf32>
    %134 = arith.mulf %133, %132 : vector<8x1xf32>
    %135 = arith.addf %127, %134 : vector<8x1xf32>
    %136 = arith.index_cast %arg0 : i32 to index
    %c7_46 = arith.constant 7 : index
    %137 = memref.load %arg2[%136, %c7_46] : memref<2x8xf32, #tpu.memory_space<smem>>
    %c7_47 = arith.constant 7 : index
    %c1_48 = arith.constant 1 : index
    %138 = memref.load %arg3[%c7_47, %c1_48] : memref<8x4xf32, #tpu.memory_space<smem>>
    %139 = arith.mulf %137, %138 : f32
    %140 = vector.extract_strided_slice %1 {offsets = [0, 7], sizes = [8, 1], strides = [1, 1]} : vector<8x8xf32> to vector<8x1xf32>
    %141 = vector.broadcast %139 : f32 to vector<8x1xf32>
    %142 = arith.mulf %141, %140 : vector<8x1xf32>
    %143 = arith.addf %135, %142 : vector<8x1xf32>
    %cst_49 = arith.constant 0.000000e+00 : f32
    %144 = vector.broadcast %cst_49 : f32 to vector<8x1xf32>
    %145 = arith.maximumf %143, %144 : vector<8x1xf32>
    %c1_50 = arith.constant 1 : index
    %c0_51 = arith.constant 0 : index
    %146 = vector.load %arg6[%c1_50, %c0_51] : memref<4x128xf32, #tpu.memory_space<vmem>>, vector<1x128xf32>
    %147 = vector.broadcast %145 : vector<8x1xf32> to vector<8x128xf32>
    %148 = vector.broadcast %146 : vector<1x128xf32> to vector<8x128xf32>
    %149 = arith.mulf %147, %148 : vector<8x128xf32>
    %150 = arith.addf %77, %149 : vector<8x128xf32>
    %c2_52 = arith.constant 2 : index
    %151 = memref.load %arg4[%c2_52] : memref<4xf32, #tpu.memory_space<smem>>
    %152 = vector.broadcast %151 : f32 to vector<8x1xf32>
    %153 = arith.index_cast %arg0 : i32 to index
    %c0_53 = arith.constant 0 : index
    %154 = memref.load %arg2[%153, %c0_53] : memref<2x8xf32, #tpu.memory_space<smem>>
    %c0_54 = arith.constant 0 : index
    %c2_55 = arith.constant 2 : index
    %155 = memref.load %arg3[%c0_54, %c2_55] : memref<8x4xf32, #tpu.memory_space<smem>>
    %156 = arith.mulf %154, %155 : f32
    %157 = vector.extract_strided_slice %1 {offsets = [0, 0], sizes = [8, 1], strides = [1, 1]} : vector<8x8xf32> to vector<8x1xf32>
    %158 = vector.broadcast %156 : f32 to vector<8x1xf32>
    %159 = arith.mulf %158, %157 : vector<8x1xf32>
    %160 = arith.addf %152, %159 : vector<8x1xf32>
    %161 = arith.index_cast %arg0 : i32 to index
    %c1_56 = arith.constant 1 : index
    %162 = memref.load %arg2[%161, %c1_56] : memref<2x8xf32, #tpu.memory_space<smem>>
    %c1_57 = arith.constant 1 : index
    %c2_58 = arith.constant 2 : index
    %163 = memref.load %arg3[%c1_57, %c2_58] : memref<8x4xf32, #tpu.memory_space<smem>>
    %164 = arith.mulf %162, %163 : f32
    %165 = vector.extract_strided_slice %1 {offsets = [0, 1], sizes = [8, 1], strides = [1, 1]} : vector<8x8xf32> to vector<8x1xf32>
    %166 = vector.broadcast %164 : f32 to vector<8x1xf32>
    %167 = arith.mulf %166, %165 : vector<8x1xf32>
    %168 = arith.addf %160, %167 : vector<8x1xf32>
    %169 = arith.index_cast %arg0 : i32 to index
    %c2_59 = arith.constant 2 : index
    %170 = memref.load %arg2[%169, %c2_59] : memref<2x8xf32, #tpu.memory_space<smem>>
    %c2_60 = arith.constant 2 : index
    %c2_61 = arith.constant 2 : index
    %171 = memref.load %arg3[%c2_60, %c2_61] : memref<8x4xf32, #tpu.memory_space<smem>>
    %172 = arith.mulf %170, %171 : f32
    %173 = vector.extract_strided_slice %1 {offsets = [0, 2], sizes = [8, 1], strides = [1, 1]} : vector<8x8xf32> to vector<8x1xf32>
    %174 = vector.broadcast %172 : f32 to vector<8x1xf32>
    %175 = arith.mulf %174, %173 : vector<8x1xf32>
    %176 = arith.addf %168, %175 : vector<8x1xf32>
    %177 = arith.index_cast %arg0 : i32 to index
    %c3_62 = arith.constant 3 : index
    %178 = memref.load %arg2[%177, %c3_62] : memref<2x8xf32, #tpu.memory_space<smem>>
    %c3_63 = arith.constant 3 : index
    %c2_64 = arith.constant 2 : index
    %179 = memref.load %arg3[%c3_63, %c2_64] : memref<8x4xf32, #tpu.memory_space<smem>>
    %180 = arith.mulf %178, %179 : f32
    %181 = vector.extract_strided_slice %1 {offsets = [0, 3], sizes = [8, 1], strides = [1, 1]} : vector<8x8xf32> to vector<8x1xf32>
    %182 = vector.broadcast %180 : f32 to vector<8x1xf32>
    %183 = arith.mulf %182, %181 : vector<8x1xf32>
    %184 = arith.addf %176, %183 : vector<8x1xf32>
    %185 = arith.index_cast %arg0 : i32 to index
    %c4_65 = arith.constant 4 : index
    %186 = memref.load %arg2[%185, %c4_65] : memref<2x8xf32, #tpu.memory_space<smem>>
    %c4_66 = arith.constant 4 : index
    %c2_67 = arith.constant 2 : index
    %187 = memref.load %arg3[%c4_66, %c2_67] : memref<8x4xf32, #tpu.memory_space<smem>>
    %188 = arith.mulf %186, %187 : f32
    %189 = vector.extract_strided_slice %1 {offsets = [0, 4], sizes = [8, 1], strides = [1, 1]} : vector<8x8xf32> to vector<8x1xf32>
    %190 = vector.broadcast %188 : f32 to vector<8x1xf32>
    %191 = arith.mulf %190, %189 : vector<8x1xf32>
    %192 = arith.addf %184, %191 : vector<8x1xf32>
    %193 = arith.index_cast %arg0 : i32 to index
    %c5_68 = arith.constant 5 : index
    %194 = memref.load %arg2[%193, %c5_68] : memref<2x8xf32, #tpu.memory_space<smem>>
    %c5_69 = arith.constant 5 : index
    %c2_70 = arith.constant 2 : index
    %195 = memref.load %arg3[%c5_69, %c2_70] : memref<8x4xf32, #tpu.memory_space<smem>>
    %196 = arith.mulf %194, %195 : f32
    %197 = vector.extract_strided_slice %1 {offsets = [0, 5], sizes = [8, 1], strides = [1, 1]} : vector<8x8xf32> to vector<8x1xf32>
    %198 = vector.broadcast %196 : f32 to vector<8x1xf32>
    %199 = arith.mulf %198, %197 : vector<8x1xf32>
    %200 = arith.addf %192, %199 : vector<8x1xf32>
    %201 = arith.index_cast %arg0 : i32 to index
    %c6_71 = arith.constant 6 : index
    %202 = memref.load %arg2[%201, %c6_71] : memref<2x8xf32, #tpu.memory_space<smem>>
    %c6_72 = arith.constant 6 : index
    %c2_73 = arith.constant 2 : index
    %203 = memref.load %arg3[%c6_72, %c2_73] : memref<8x4xf32, #tpu.memory_space<smem>>
    %204 = arith.mulf %202, %203 : f32
    %205 = vector.extract_strided_slice %1 {offsets = [0, 6], sizes = [8, 1], strides = [1, 1]} : vector<8x8xf32> to vector<8x1xf32>
    %206 = vector.broadcast %204 : f32 to vector<8x1xf32>
    %207 = arith.mulf %206, %205 : vector<8x1xf32>
    %208 = arith.addf %200, %207 : vector<8x1xf32>
    %209 = arith.index_cast %arg0 : i32 to index
    %c7_74 = arith.constant 7 : index
    %210 = memref.load %arg2[%209, %c7_74] : memref<2x8xf32, #tpu.memory_space<smem>>
    %c7_75 = arith.constant 7 : index
    %c2_76 = arith.constant 2 : index
    %211 = memref.load %arg3[%c7_75, %c2_76] : memref<8x4xf32, #tpu.memory_space<smem>>
    %212 = arith.mulf %210, %211 : f32
    %213 = vector.extract_strided_slice %1 {offsets = [0, 7], sizes = [8, 1], strides = [1, 1]} : vector<8x8xf32> to vector<8x1xf32>
    %214 = vector.broadcast %212 : f32 to vector<8x1xf32>
    %215 = arith.mulf %214, %213 : vector<8x1xf32>
    %216 = arith.addf %208, %215 : vector<8x1xf32>
    %cst_77 = arith.constant 0.000000e+00 : f32
    %217 = vector.broadcast %cst_77 : f32 to vector<8x1xf32>
    %218 = arith.maximumf %216, %217 : vector<8x1xf32>
    %c2_78 = arith.constant 2 : index
    %c0_79 = arith.constant 0 : index
    %219 = vector.load %arg6[%c2_78, %c0_79] : memref<4x128xf32, #tpu.memory_space<vmem>>, vector<1x128xf32>
    %220 = vector.broadcast %218 : vector<8x1xf32> to vector<8x128xf32>
    %221 = vector.broadcast %219 : vector<1x128xf32> to vector<8x128xf32>
    %222 = arith.mulf %220, %221 : vector<8x128xf32>
    %223 = arith.addf %150, %222 : vector<8x128xf32>
    %c3_80 = arith.constant 3 : index
    %224 = memref.load %arg4[%c3_80] : memref<4xf32, #tpu.memory_space<smem>>
    %225 = vector.broadcast %224 : f32 to vector<8x1xf32>
    %226 = arith.index_cast %arg0 : i32 to index
    %c0_81 = arith.constant 0 : index
    %227 = memref.load %arg2[%226, %c0_81] : memref<2x8xf32, #tpu.memory_space<smem>>
    %c0_82 = arith.constant 0 : index
    %c3_83 = arith.constant 3 : index
    %228 = memref.load %arg3[%c0_82, %c3_83] : memref<8x4xf32, #tpu.memory_space<smem>>
    %229 = arith.mulf %227, %228 : f32
    %230 = vector.extract_strided_slice %1 {offsets = [0, 0], sizes = [8, 1], strides = [1, 1]} : vector<8x8xf32> to vector<8x1xf32>
    %231 = vector.broadcast %229 : f32 to vector<8x1xf32>
    %232 = arith.mulf %231, %230 : vector<8x1xf32>
    %233 = arith.addf %225, %232 : vector<8x1xf32>
    %234 = arith.index_cast %arg0 : i32 to index
    %c1_84 = arith.constant 1 : index
    %235 = memref.load %arg2[%234, %c1_84] : memref<2x8xf32, #tpu.memory_space<smem>>
    %c1_85 = arith.constant 1 : index
    %c3_86 = arith.constant 3 : index
    %236 = memref.load %arg3[%c1_85, %c3_86] : memref<8x4xf32, #tpu.memory_space<smem>>
    %237 = arith.mulf %235, %236 : f32
    %238 = vector.extract_strided_slice %1 {offsets = [0, 1], sizes = [8, 1], strides = [1, 1]} : vector<8x8xf32> to vector<8x1xf32>
    %239 = vector.broadcast %237 : f32 to vector<8x1xf32>
    %240 = arith.mulf %239, %238 : vector<8x1xf32>
    %241 = arith.addf %233, %240 : vector<8x1xf32>
    %242 = arith.index_cast %arg0 : i32 to index
    %c2_87 = arith.constant 2 : index
    %243 = memref.load %arg2[%242, %c2_87] : memref<2x8xf32, #tpu.memory_space<smem>>
    %c2_88 = arith.constant 2 : index
    %c3_89 = arith.constant 3 : index
    %244 = memref.load %arg3[%c2_88, %c3_89] : memref<8x4xf32, #tpu.memory_space<smem>>
    %245 = arith.mulf %243, %244 : f32
    %246 = vector.extract_strided_slice %1 {offsets = [0, 2], sizes = [8, 1], strides = [1, 1]} : vector<8x8xf32> to vector<8x1xf32>
    %247 = vector.broadcast %245 : f32 to vector<8x1xf32>
    %248 = arith.mulf %247, %246 : vector<8x1xf32>
    %249 = arith.addf %241, %248 : vector<8x1xf32>
    %250 = arith.index_cast %arg0 : i32 to index
    %c3_90 = arith.constant 3 : index
    %251 = memref.load %arg2[%250, %c3_90] : memref<2x8xf32, #tpu.memory_space<smem>>
    %c3_91 = arith.constant 3 : index
    %c3_92 = arith.constant 3 : index
    %252 = memref.load %arg3[%c3_91, %c3_92] : memref<8x4xf32, #tpu.memory_space<smem>>
    %253 = arith.mulf %251, %252 : f32
    %254 = vector.extract_strided_slice %1 {offsets = [0, 3], sizes = [8, 1], strides = [1, 1]} : vector<8x8xf32> to vector<8x1xf32>
    %255 = vector.broadcast %253 : f32 to vector<8x1xf32>
    %256 = arith.mulf %255, %254 : vector<8x1xf32>
    %257 = arith.addf %249, %256 : vector<8x1xf32>
    %258 = arith.index_cast %arg0 : i32 to index
    %c4_93 = arith.constant 4 : index
    %259 = memref.load %arg2[%258, %c4_93] : memref<2x8xf32, #tpu.memory_space<smem>>
    %c4_94 = arith.constant 4 : index
    %c3_95 = arith.constant 3 : index
    %260 = memref.load %arg3[%c4_94, %c3_95] : memref<8x4xf32, #tpu.memory_space<smem>>
    %261 = arith.mulf %259, %260 : f32
    %262 = vector.extract_strided_slice %1 {offsets = [0, 4], sizes = [8, 1], strides = [1, 1]} : vector<8x8xf32> to vector<8x1xf32>
    %263 = vector.broadcast %261 : f32 to vector<8x1xf32>
    %264 = arith.mulf %263, %262 : vector<8x1xf32>
    %265 = arith.addf %257, %264 : vector<8x1xf32>
    %266 = arith.index_cast %arg0 : i32 to index
    %c5_96 = arith.constant 5 : index
    %267 = memref.load %arg2[%266, %c5_96] : memref<2x8xf32, #tpu.memory_space<smem>>
    %c5_97 = arith.constant 5 : index
    %c3_98 = arith.constant 3 : index
    %268 = memref.load %arg3[%c5_97, %c3_98] : memref<8x4xf32, #tpu.memory_space<smem>>
    %269 = arith.mulf %267, %268 : f32
    %270 = vector.extract_strided_slice %1 {offsets = [0, 5], sizes = [8, 1], strides = [1, 1]} : vector<8x8xf32> to vector<8x1xf32>
    %271 = vector.broadcast %269 : f32 to vector<8x1xf32>
    %272 = arith.mulf %271, %270 : vector<8x1xf32>
    %273 = arith.addf %265, %272 : vector<8x1xf32>
    %274 = arith.index_cast %arg0 : i32 to index
    %c6_99 = arith.constant 6 : index
    %275 = memref.load %arg2[%274, %c6_99] : memref<2x8xf32, #tpu.memory_space<smem>>
    %c6_100 = arith.constant 6 : index
    %c3_101 = arith.constant 3 : index
    %276 = memref.load %arg3[%c6_100, %c3_101] : memref<8x4xf32, #tpu.memory_space<smem>>
    %277 = arith.mulf %275, %276 : f32
    %278 = vector.extract_strided_slice %1 {offsets = [0, 6], sizes = [8, 1], strides = [1, 1]} : vector<8x8xf32> to vector<8x1xf32>
    %279 = vector.broadcast %277 : f32 to vector<8x1xf32>
    %280 = arith.mulf %279, %278 : vector<8x1xf32>
    %281 = arith.addf %273, %280 : vector<8x1xf32>
    %282 = arith.index_cast %arg0 : i32 to index
    %c7_102 = arith.constant 7 : index
    %283 = memref.load %arg2[%282, %c7_102] : memref<2x8xf32, #tpu.memory_space<smem>>
    %c7_103 = arith.constant 7 : index
    %c3_104 = arith.constant 3 : index
    %284 = memref.load %arg3[%c7_103, %c3_104] : memref<8x4xf32, #tpu.memory_space<smem>>
    %285 = arith.mulf %283, %284 : f32
    %286 = vector.extract_strided_slice %1 {offsets = [0, 7], sizes = [8, 1], strides = [1, 1]} : vector<8x8xf32> to vector<8x1xf32>
    %287 = vector.broadcast %285 : f32 to vector<8x1xf32>
    %288 = arith.mulf %287, %286 : vector<8x1xf32>
    %289 = arith.addf %281, %288 : vector<8x1xf32>
    %cst_105 = arith.constant 0.000000e+00 : f32
    %290 = vector.broadcast %cst_105 : f32 to vector<8x1xf32>
    %291 = arith.maximumf %289, %290 : vector<8x1xf32>
    %c3_106 = arith.constant 3 : index
    %c0_107 = arith.constant 0 : index
    %292 = vector.load %arg6[%c3_106, %c0_107] : memref<4x128xf32, #tpu.memory_space<vmem>>, vector<1x128xf32>
    %293 = vector.broadcast %291 : vector<8x1xf32> to vector<8x128xf32>
    %294 = vector.broadcast %292 : vector<1x128xf32> to vector<8x128xf32>
    %295 = arith.mulf %293, %294 : vector<8x128xf32>
    %296 = arith.addf %223, %295 : vector<8x128xf32>
    %c0_108 = arith.constant 0 : index
    %c0_109 = arith.constant 0 : index
    %c0_110 = arith.constant 0 : index
    %297 = vector.load %arg8[%c0_108, %c0_109, %c0_110] : memref<1x8x128xf32, #tpu.memory_space<vmem>>, vector<1x8x128xf32>
    %298 = vector.shape_cast %297 : vector<1x8x128xf32> to vector<8x128xf32>
    %299 = vector.shape_cast %296 : vector<8x128xf32> to vector<1x8x128xf32>
    tpu.vector_store %arg8[%c0_108, %c0_109, %c0_110], %299 {strides = array<i32>} : memref<1x8x128xf32, #tpu.memory_space<vmem>>, vector<1x8x128xf32>,
    return
  }
  func.func @transform_0(%arg0: i32, %arg1: i32) -> (i32, i32) {
    %c0_i32 = arith.constant 0 : i32
    %c0_i32_0 = arith.constant 0 : i32
    %c0_i32_1 = arith.constant 0 : i32
    return %c0_i32, %c0_i32_0 : i32, i32
  }
  func.func @transform_1(%arg0: i32, %arg1: i32) -> (i32, i32) {
    %c0_i32 = arith.constant 0 : i32
    %c0_i32_0 = arith.constant 0 : i32
    %c0_i32_1 = arith.constant 0 : i32
    return %c0_i32, %c0_i32_0 : i32, i32
  }
  func.func @transform_2(%arg0: i32, %arg1: i32) -> i32 {
    %c0_i32 = arith.constant 0 : i32
    %c0_i32_0 = arith.constant 0 : i32
    return %c0_i32 : i32
  }
  func.func @transform_3(%arg0: i32, %arg1: i32) -> (i32, i32, i32) {
    %c0_i32 = arith.constant 0 : i32
    %c0_i32_0 = arith.constant 0 : i32
    return %arg0, %arg1, %c0_i32 : i32, i32, i32
  }
  func.func @transform_4(%arg0: i32, %arg1: i32) -> (i32, i32) {
    %c0_i32 = arith.constant 0 : i32
    %c0_i32_0 = arith.constant 0 : i32
    %c0_i32_1 = arith.constant 0 : i32
    return %c0_i32, %c0_i32_0 : i32, i32
  }
  func.func @transform_5(%arg0: i32, %arg1: i32) -> (i32, i32) {
    %c0_i32 = arith.constant 0 : i32
    %c0_i32_0 = arith.constant 0 : i32
    %c0_i32_1 = arith.constant 0 : i32
    return %c0_i32, %c0_i32_0 : i32, i32
  }
  func.func @transform_6(%arg0: i32, %arg1: i32) -> (i32, i32, i32) {
    %c0_i32 = arith.constant 0 : i32
    %c0_i32_0 = arith.constant 0 : i32
    return %arg0, %arg1, %c0_i32 : i32, i32, i32
  }
}

</mosaic_0001>

<llo_original>
// kernel: tpu_custom_call.1
$region0: #{tpu_custom_call.1}
  #allocation0 [shape = 'u32[]', space=smem, size = 0x4, offset = 0x4, fixed_abs, tag = 'smem constant byte address 0x4 - core index']
  #allocation1 [shape = 'u32[72,128]{1,0:T(1,128)}', space=vmem, size = 0x9000, scoped, tag = 'internal scratch']
  %s0 = inlined_call_operand.vmem [shape: f32[2,8], index: 0, kind: input, shape index: {}]
  %s1 = inlined_call_operand.vmem [shape: f32[8,4], index: 1, kind: input, shape index: {}]
  %s2 = inlined_call_operand.vmem [shape: f32[4], index: 2, kind: input, shape index: {}]
  %s3 = inlined_call_operand.hbm [shape: f32[2,8,8], index: 3, kind: input, shape index: {}]
  %s4 = inlined_call_operand.vmem [shape: f32[4,128], index: 4, kind: input, shape index: {}]
  %s5 = inlined_call_operand.vmem [shape: f32[1,128], index: 5, kind: input, shape index: {}]
  %s6 = inlined_call_operand.hbm [shape: f32[2,8,128], index: 6, kind: output, shape index: {}]
  %s7 = sld [smem:[#allocation0]]
  $region73: #{tpu_custom_call.1} parent=0
    _
  %s9 = ssub.s32 1, %s7
  %s10 = scalar_select 0, %s9, %s7
  $region1: #{tpu_custom_call.1} parent=0
    #allocation2 [shape = 'u8[1024]{0}', space=smem, size = 0x400, scoped, tag = 'input window, operand 0, single buffered']
    #allocation3 [shape = 's32[2]{0}', space=sflag, size = 0x8, scoped, tag = 'scoped memory for tpu_custom_call.1']
    #allocation4 [shape = 's32[2]{0}', space=sflag, size = 0x8, scoped, tag = 'scoped memory for tpu_custom_call.1']
    #allocation5 [shape = 's32[2]{0}', space=sflag, size = 0x8, scoped, tag = 'scoped memory for tpu_custom_call.1']
    #allocation6 [shape = 'u8[4096]{0}', space=smem, size = 0x1000, scoped, tag = 'input window, operand 1, single buffered']
    #allocation7 [shape = 's32[1]{0}', space=sflag, size = 0x4, scoped, tag = 'scoped memory for tpu_custom_call.1']
    #allocation8 [shape = 'u8[512]{0}', space=smem, size = 0x200, scoped, tag = 'input window, operand 2, single buffered']
    #allocation9 [shape = 'u8[8192]{0}', space=vmem, size = 0x2000, scoped, tag = 'input window, operand 3']
    #allocation10 [shape = 'u8[8192]{0}', space=vmem, size = 0x2000, scoped, tag = 'output window, operand 0']
    %11 = vsyncpa [#allocation5], 0
    %12 = vsyncpa [#allocation7], 0
    %13 = vsyncpa [#allocation3], 0
    %s14 = scalar_lea.sflag [#allocation3], 1
    %15 = vsyncpa %s14, 0
    %16 = vsyncpa [#allocation4], 0
    %s17 = scalar_lea.sflag [#allocation4], 1
    %18 = vsyncpa %s17, 0
    loop: start=0, step=1, limit=4
    $region2: #{tpu_custom_call.1} parent=1 // loop_pre_header
      _
    $region3: #{tpu_custom_call.1} parent=1 // loop_header
      %s20 = sphi 0, %s24
      %p21 = scmp.ge.s32.totalorder %s20, 4
      %s27 = sphi 0, %s39
      %s28 = sphi 0, %s35
      %s29 = sphi 0, %s27
      %s30 = sphi 0, %s28
      %s31 = sphi 0, %s29
      %s32 = sphi 0, %s30
      %s40 = sphi 0, %s40
      %s42 = sphi 0, %s40
      %s43 = sphi 0, %s42
      %s57 = sphi 0, %s43
      %s61 = sphi 0, %s61
      %s63 = sphi 0, %s61
      %s64 = sphi 0, %s63
      %s78 = sphi 0, %s64
      %s82 = sphi 0, %s82
      %s84 = sphi 0, %s82
      %s85 = sphi 0, %s84
      %s99 = sphi 0, %s85
      %s107 = sphi 0, %s109
      %s110 = sphi 0, %s107
      %s111 = sphi 0, %s110
      %s127 = sphi 0, %s111
      %s131 = sphi 0, %s131
      %s133 = sphi 0, %s131
      %s134 = sphi 0, %s133
      %s148 = sphi 0, %s134
      %s152 = sphi 0, %s152
      %s154 = sphi 0, %s152
      %s155 = sphi 0, %s154
      %s169 = sphi 0, %s155
      %s177 = sphi 0, %s179
      %s180 = sphi 0, %s177
      %s181 = sphi 0, %s180
      %s197 = sphi 0, %s181
    $region4: #{tpu_custom_call.1} parent=1 // loop_header_branch
      %23 = sbr.rel (%p21) target = $region8
    $region5: #{tpu_custom_call.1} parent=1 // loop_body
      %s25 = ssub.s32 %s20, 1
      %s26 = ssub.s32 %s20, 2
      %s33 = sadd.s32 1, %s28
      %p34 = scmp.ge.s32.totalorder %s33, 1
      %s35 = scalar_select %p34, 0, %s33
      %s36 = sadd.s32 1, %s27
      %s37 = scalar_select %p34, %s36, %s27
      %p38 = scmp.ge.s32.totalorder %s37, 2
      %s39 = scalar_select %p38, 0, %s37
      %s41 = sadd.s32 %s40, 1
      %p44 = scmp.eq.s32.totalorder %s20, 1
      %p45 = scmp.ne.s32.totalorder %s40, %s42
      %p46 = scmp.eq.s32.totalorder %s20, 0
      %p47 = por %p45, %p46
      %p48 = scmp.ne.s32.totalorder %s40, %s42
      %p49 = scmp.eq.s32.totalorder %s25, 1
      %p50 = por %p48, %p49
      %p51 = scmp.ne.s32.totalorder %s42, %s43
      %p52 = scmp.eq.s32.totalorder %s25, 0
      %p53 = por %p51, %p52
      %p54 = scmp.ne.s32.totalorder %s42, %s43
      %p55 = scmp.eq.s32.totalorder %s26, 1
      %p56 = por %p54, %p55
      %p58 = scmp.ne.s32.totalorder %s43, %s57
      %p59 = scmp.eq.s32.totalorder %s26, 0
      %p60 = por %p58, %p59
      %s62 = sadd.s32 %s61, 1
      %p65 = scmp.eq.s32.totalorder %s20, 1
      %p66 = scmp.ne.s32.totalorder %s61, %s63
      %p67 = scmp.eq.s32.totalorder %s20, 0
      %p68 = por %p66, %p67
      %p69 = scmp.ne.s32.totalorder %s61, %s63
      %p70 = scmp.eq.s32.totalorder %s25, 1
      %p71 = por %p69, %p70
      %p72 = scmp.ne.s32.totalorder %s63, %s64
      %p73 = scmp.eq.s32.totalorder %s25, 0
      %p74 = por %p72, %p73
      %p75 = scmp.ne.s32.totalorder %s63, %s64
      %p76 = scmp.eq.s32.totalorder %s26, 1
      %p77 = por %p75, %p76
      %p79 = scmp.ne.s32.totalorder %s64, %s78
      %p80 = scmp.eq.s32.totalorder %s26, 0
      %p81 = por %p79, %p80
      %s83 = sadd.s32 %s82, 1
      %p86 = scmp.eq.s32.totalorder %s20, 1
      %p87 = scmp.ne.s32.totalorder %s82, %s84
      %p88 = scmp.eq.s32.totalorder %s20, 0
      %p89 = por %p87, %p88
      %p90 = scmp.ne.s32.totalorder %s82, %s84
      %p91 = scmp.eq.s32.totalorder %s25, 1
      %p92 = por %p90, %p91
      %p93 = scmp.ne.s32.totalorder %s84, %s85
      %p94 = scmp.eq.s32.totalorder %s25, 0
      %p95 = por %p93, %p94
      %p96 = scmp.ne.s32.totalorder %s84, %s85
      %p97 = scmp.eq.s32.totalorder %s26, 1
      %p98 = por %p96, %p97
      %p100 = scmp.ne.s32.totalorder %s85, %s99
      %p101 = scmp.eq.s32.totalorder %s26, 0
      %p102 = por %p100, %p101
      %s103 = ssub.s32 %s27, %s39
      %s104 = ssub.s32 %s28, %s35
      %s105 = sor.u32 %s103, %s104
      %p106 = scmp.eq.s32.totalorder %s105, 0
      %s108 = sadd.s32 %s107, 1
      %s109 = scalar_select %p106, %s107, %s108
      %p112 = pneg %p106
      %p113 = scmp.eq.s32.totalorder %s20, 1
      %p114 = por %p112, %p113
      %p115 = scmp.ne.s32.totalorder %s107, %s110
      %p116 = scmp.eq.s32.totalorder %s20, 0
      %p117 = por %p115, %p116
      %p118 = scmp.ne.s32.totalorder %s107, %s110
      %p119 = scmp.eq.s32.totalorder %s25, 1
      %p120 = por %p118, %p119
      %p121 = scmp.ne.s32.totalorder %s110, %s111
      %p122 = scmp.eq.s32.totalorder %s25, 0
      %p123 = por %p121, %p122
      %p124 = scmp.ne.s32.totalorder %s110, %s111
      %p125 = scmp.eq.s32.totalorder %s26, 1
      %p126 = por %p124, %p125
      %p128 = scmp.ne.s32.totalorder %s111, %s127
      %p129 = scmp.eq.s32.totalorder %s26, 0
      %p130 = por %p128, %p129
      %s132 = sadd.s32 %s131, 1
      %p135 = scmp.eq.s32.totalorder %s20, 1
      %p136 = scmp.ne.s32.totalorder %s131, %s133
      %p137 = scmp.eq.s32.totalorder %s20, 0
      %p138 = por %p136, %p137
      %p139 = scmp.ne.s32.totalorder %s131, %s133
      %p140 = scmp.eq.s32.totalorder %s25, 1
      %p141 = por %p139, %p140
      %p142 = scmp.ne.s32.totalorder %s133, %s134
      %p143 = scmp.eq.s32.totalorder %s25, 0
      %p144 = por %p142, %p143
      %p145 = scmp.ne.s32.totalorder %s133, %s134
      %p146 = scmp.eq.s32.totalorder %s26, 1
      %p147 = por %p145, %p146
      %p149 = scmp.ne.s32.totalorder %s134, %s148
      %p150 = scmp.eq.s32.totalorder %s26, 0
      %p151 = por %p149, %p150
      %s153 = sadd.s32 %s152, 1
      %p156 = scmp.eq.s32.totalorder %s20, 1
      %p157 = scmp.ne.s32.totalorder %s152, %s154
      %p158 = scmp.eq.s32.totalorder %s20, 0
      %p159 = por %p157, %p158
      %p160 = scmp.ne.s32.totalorder %s152, %s154
      %p161 = scmp.eq.s32.totalorder %s25, 1
      %p162 = por %p160, %p161
      %p163 = scmp.ne.s32.totalorder %s154, %s155
      %p164 = scmp.eq.s32.totalorder %s25, 0
      %p165 = por %p163, %p164
      %p166 = scmp.ne.s32.totalorder %s154, %s155
      %p167 = scmp.eq.s32.totalorder %s26, 1
      %p168 = por %p166, %p167
      %p170 = scmp.ne.s32.totalorder %s155, %s169
      %p171 = scmp.eq.s32.totalorder %s26, 0
      %p172 = por %p170, %p171
      %s173 = ssub.s32 %s27, %s39
      %s174 = ssub.s32 %s28, %s35
      %s175 = sor.u32 %s173, %s174
      %p176 = scmp.eq.s32.totalorder %s175, 0
      %s178 = sadd.s32 %s177, 1
      %s179 = scalar_select %p176, %s177, %s178
      %p182 = pneg %p176
      %p183 = scmp.eq.s32.totalorder %s20, 1
      %p184 = por %p182, %p183
      %p185 = scmp.ne.s32.totalorder %s177, %s180
      %p186 = scmp.eq.s32.totalorder %s20, 0
      %p187 = por %p185, %p186
      %p188 = scmp.ne.s32.totalorder %s177, %s180
      %p189 = scmp.eq.s32.totalorder %s25, 1
      %p190 = por %p188, %p189
      %p191 = scmp.ne.s32.totalorder %s180, %s181
      %p192 = scmp.eq.s32.totalorder %s25, 0
      %p193 = por %p191, %p192
      %p194 = scmp.ne.s32.totalorder %s180, %s181
      %p195 = scmp.eq.s32.totalorder %s26, 1
      %p196 = por %p194, %p195
      %p198 = scmp.ne.s32.totalorder %s181, %s197
      %p199 = scmp.eq.s32.totalorder %s26, 0
      %p200 = por %p198, %p199
      %p201 = scmp.le.s32.totalorder 1, %s20
      %p202 = scmp.lt.s32.totalorder %s20, 3
      %p203 = pnand %p201, %p202
      %p204 = pneg %p203
      // Predicated region
      $region9: #{tpu_custom_call.1} parent=5 // pred_check
        _
      $region10: #{tpu_custom_call.1} parent=5 // pred_check_branch
        %206 = sbr.rel (%p203) target = $region12
      $region11: #{tpu_custom_call.1} parent=5 // pred_region
        %s207 = ssub.s32 %s20, 1
        // Predicated region
        $region13: #{tpu_custom_call.1} parent=11 // pred_check
          %p208 = pneg %p53
        $region14: #{tpu_custom_call.1} parent=11 // pred_check_branch
          %210 = sbr.rel (%p208) target = $region16
        $region15: #{tpu_custom_call.1} parent=11 // pred_region
          %212 = vsyncadd [#allocation5], 0
          %s214 = sshll.u32 %s0, 4
          %s215 = int_to_ptr.vmem [resolvable:$true] %s214
          %217 = dma.vmem_to_smem %s215, 32, [#allocation2], [#allocation5]
        $region16: #{tpu_custom_call.1} parent=11 // pred_fallthru
          _
        // Predicated region
        $region17: #{tpu_custom_call.1} parent=11 // pred_check
          %p218 = pneg %p74
        $region18: #{tpu_custom_call.1} parent=11 // pred_check_branch
          %220 = sbr.rel (%p218) target = $region20
        $region19: #{tpu_custom_call.1} parent=11 // pred_region
          %222 = vsyncadd [#allocation7], 0
          %s224 = sshll.u32 %s1, 4
          %s225 = int_to_ptr.vmem [resolvable:$true] %s224
          %227 = dma.vmem_to_smem %s225, 128, [#allocation6], [#allocation7]
        $region20: #{tpu_custom_call.1} parent=11 // pred_fallthru
          _
        // Predicated region
        $region21: #{tpu_custom_call.1} parent=11 // pred_check
          %p228 = pneg %p95
        $region22: #{tpu_custom_call.1} parent=11 // pred_check_branch
          %230 = sbr.rel (%p228) target = $region24
        $region23: #{tpu_custom_call.1} parent=11 // pred_region
          %232 = vsyncadd [#allocation7], 0
          %s234 = sshll.u32 %s2, 4
          %s235 = int_to_ptr.vmem [resolvable:$true] %s234
          %237 = dma.vmem_to_smem %s235, 16, [#allocation8], [#allocation7]
        $region24: #{tpu_custom_call.1} parent=11 // pred_fallthru
          _
        // Predicated region
        $region25: #{tpu_custom_call.1} parent=11 // pred_check
          %p238 = pneg %p144
        $region26: #{tpu_custom_call.1} parent=11 // pred_check_branch
          %240 = sbr.rel (%p238) target = $region28
        $region27: #{tpu_custom_call.1} parent=11 // pred_region
          _
        $region28: #{tpu_custom_call.1} parent=11 // pred_fallthru
          _
        // Predicated region
        $region29: #{tpu_custom_call.1} parent=11 // pred_check
          %p241 = pneg %p165
        $region30: #{tpu_custom_call.1} parent=11 // pred_check_branch
          %243 = sbr.rel (%p241) target = $region32
        $region31: #{tpu_custom_call.1} parent=11 // pred_region
          _
        $region32: #{tpu_custom_call.1} parent=11 // pred_fallthru
          _
      $region12: #{tpu_custom_call.1} parent=5 // pred_fallthru
        _
      %p244 = scmp.lt.s32.totalorder %s20, 2
      // Predicated region
      $region33: #{tpu_custom_call.1} parent=5 // pred_check
        %p245 = pneg %p244
      $region34: #{tpu_custom_call.1} parent=5 // pred_check_branch
        %247 = sbr.rel (%p245) target = $region36
      $region35: #{tpu_custom_call.1} parent=5 // pred_region
        // Predicated region
        $region37: #{tpu_custom_call.1} parent=35 // pred_check
          %p248 = pneg %p117
        $region38: #{tpu_custom_call.1} parent=35 // pred_check_branch
          %250 = sbr.rel (%p248) target = $region40
        $region39: #{tpu_custom_call.1} parent=35 // pred_region
          %s251 = sand.u32 %s107, 1
          %s252 = scalar_lea.sflag [#allocation3], %s251
          %s253 = sand.u32 %s107, 1
          %s254 = smul.addr %s253, 8
          %s255 = scalar_lea.vmem [#allocation9], %s254
          %257 = vsyncadd %s252, 0
          %s258 = sadd.s32 %s28, %s27
          %s259 = smul.addr %s258, 8
          %s260 = scalar_lea.hbm %s3, %s259
          %s262 = sshll.u32 %s260, 4
          %s263 = int_to_ptr.hbm [resolvable:$true] %s262
          %s264 = sshll.u32 %s255, 4
          %s265 = int_to_ptr.vmem [resolvable:$true] %s264
          %267 = dma.hbm_to_vmem [thread:$0]  %s263, 128, %s265, %s252
        $region40: #{tpu_custom_call.1} parent=35 // pred_fallthru
          _
      $region36: #{tpu_custom_call.1} parent=5 // pred_fallthru
        _
      %p268 = scmp.le.s32.totalorder 1, %s20
      %p269 = scmp.lt.s32.totalorder %s20, 3
      %p270 = pnand %p268, %p269
      %p271 = pneg %p270
      // Predicated region
      $region41: #{tpu_custom_call.1} parent=5 // pred_check
        _
      $region42: #{tpu_custom_call.1} parent=5 // pred_check_branch
        %273 = sbr.rel (%p270) target = $region44
      $region43: #{tpu_custom_call.1} parent=5 // pred_region
        %s274 = ssub.s32 %s20, 1
        // Predicated region
        $region45: #{tpu_custom_call.1} parent=43 // pred_check
          %p275 = pneg %p53
        $region46: #{tpu_custom_call.1} parent=43 // pred_check_branch
          %277 = sbr.rel (%p275) target = $region48
        $region47: #{tpu_custom_call.1} parent=43 // pred_region
          %279 = dma.done [#allocation5], 32
        $region48: #{tpu_custom_call.1} parent=43 // pred_fallthru
          _
        // Predicated region
        $region49: #{tpu_custom_call.1} parent=43 // pred_check
          %p280 = pneg %p74
        $region50: #{tpu_custom_call.1} parent=43 // pred_check_branch
          %282 = sbr.rel (%p280) target = $region52
        $region51: #{tpu_custom_call.1} parent=43 // pred_region
          %284 = dma.done [#allocation7], 128
        $region52: #{tpu_custom_call.1} parent=43 // pred_fallthru
          _
        // Predicated region
        $region53: #{tpu_custom_call.1} parent=43 // pred_check
          %p285 = pneg %p95
        $region54: #{tpu_custom_call.1} parent=43 // pred_check_branch
          %287 = sbr.rel (%p285) target = $region56
        $region55: #{tpu_custom_call.1} parent=43 // pred_region
          %289 = dma.done [#allocation7], 16
        $region56: #{tpu_custom_call.1} parent=43 // pred_fallthru
          _
        %s290 = sand.u32 %s110, 1
        %s291 = scalar_lea.sflag [#allocation3], %s290
        %s292 = sand.u32 %s110, 1
        %s293 = smul.addr %s292, 8
        %s294 = scalar_lea.vmem [#allocation9], %s293
        // Predicated region
        $region57: #{tpu_custom_call.1} parent=43 // pred_check
          %p295 = pneg %p123
        $region58: #{tpu_custom_call.1} parent=43 // pred_check_branch
          %297 = sbr.rel (%p295) target = $region60
        $region59: #{tpu_custom_call.1} parent=43 // pred_region
          %299 = dma.done %s291, 128
        $region60: #{tpu_custom_call.1} parent=43 // pred_fallthru
          _
        %300 = sfence
        %p301 = pneg %p53
        %p302 = pneg %p50
        %p303 = pneg %p74
        %p304 = pneg %p71
        %p305 = pneg %p95
        %p306 = pneg %p92
        %s307 = sand.u32 %s110, 1
        %s308 = scalar_lea.sflag [#allocation3], %s307
        %s309 = sand.u32 %s110, 1
        %s310 = smul.addr %s309, 8
        %s311 = scalar_lea.vmem [#allocation9], %s310
        %p312 = pneg %p123
        %p313 = pneg %p120
        %p314 = pneg %p144
        %p315 = pneg %p141
        %p316 = pneg %p165
        %p317 = pneg %p162
        %p318 = pneg %p193
        %p319 = pneg %p190
        %s320 = sand.u32 %s180, 1
        %s321 = scalar_lea.sflag [#allocation4], %s320
        %s322 = sand.u32 %s180, 1
        %s323 = smul.addr %s322, 8
        %s324 = scalar_lea.vmem [#allocation10], %s323
        %v325 = vld [vmem:[%s294] sm:$0xff]
        %v326 = vld [vmem:[%s5] sm:$0x1]
        %v328 = vperm.slane %v326, 0
        %s330 = sld [smem:[#allocation8]]
        %v331 = vstv %s330
        %s332 = smul.u32 %s29, 128
        %s333 = sld [smem:[#allocation2 + %s332]]
        %s334 = sld [smem:[#allocation6]]
        %s335 = smul.f32 %s333, %s334
        %v336 = vstv %s335
        %v337 = vmul.f32 %v336, %v325
        %v338 = vadd.f32 %v331, %v337
        %s339 = sadd.s32 %s332, 1
        %s340 = sld [smem:[#allocation2 + %s339]]
        %s341 = sld [smem:[#allocation6 + $0x80]]
        %s342 = smul.f32 %s340, %s341
        %v343 = vstv %s342
        %v344 = vmul.f32 %v343, %v325
        %346 = vrot.lane.b32.xlu0 %v344, 127
        %v347 = vpop.permute.xlu0 %346
        %v349 = vadd.f32 %v338, %v347
        %s350 = sadd.s32 %s332, 2
        %s351 = sld [smem:[#allocation2 + %s350]]
        %s352 = sld [smem:[#allocation6 + $0x100]]
        %s353 = smul.f32 %s351, %s352
        %v354 = vstv %s353
        %v355 = vmul.f32 %v354, %v325
        %357 = vrot.lane.b32.xlu0 %v355, 126
        %v358 = vpop.permute.xlu0 %357
        %v360 = vadd.f32 %v349, %v358
        %s361 = sadd.s32 %s332, 3
        %s362 = sld [smem:[#allocation2 + %s361]]
        %s363 = sld [smem:[#allocation6 + $0x180]]
        %s364 = smul.f32 %s362, %s363
        %v365 = vstv %s364
        %v366 = vmul.f32 %v365, %v325
        %368 = vrot.lane.b32.xlu0 %v366, 125
        %v369 = vpop.permute.xlu0 %368
        %v371 = vadd.f32 %v360, %v369
        %s372 = sadd.s32 %s332, 4
        %s373 = sld [smem:[#allocation2 + %s372]]
        %s374 = sld [smem:[#allocation6 + $0x200]]
        %s375 = smul.f32 %s373, %s374
        %v376 = vstv %s375
        %v377 = vmul.f32 %v376, %v325
        %379 = vrot.lane.b32.xlu0 %v377, 124
        %v380 = vpop.permute.xlu0 %379
        %v382 = vadd.f32 %v371, %v380
        %s383 = sadd.s32 %s332, 5
        %s384 = sld [smem:[#allocation2 + %s383]]
        %s385 = sld [smem:[#allocation6 + $0x280]]
        %s386 = smul.f32 %s384, %s385
        %v387 = vstv %s386
        %v388 = vmul.f32 %v387, %v325
        %390 = vrot.lane.b32.xlu0 %v388, 123
        %v391 = vpop.permute.xlu0 %390
        %v393 = vadd.f32 %v382, %v391
        %s394 = sadd.s32 %s332, 6
        %s395 = sld [smem:[#allocation2 + %s394]]
        %s396 = sld [smem:[#allocation6 + $0x300]]
        %s397 = smul.f32 %s395, %s396
        %v398 = vstv %s397
        %v399 = vmul.f32 %v398, %v325
        %401 = vrot.lane.b32.xlu0 %v399, 122
        %v402 = vpop.permute.xlu0 %401
        %v404 = vadd.f32 %v393, %v402
        %s405 = sadd.s32 %s332, 7
        %s406 = sld [smem:[#allocation2 + %s405]]
        %s407 = sld [smem:[#allocation6 + $0x380]]
        %s408 = smul.f32 %s406, %s407
        %v409 = vstv %s408
        %v410 = vmul.f32 %v409, %v325
        %412 = vrot.lane.b32.xlu0 %v410, 121
        %v413 = vpop.permute.xlu0 %412
        %v415 = vadd.f32 %v404, %v413
        %v416 = vmax.f32 %v415, 0.0
        %v417 = vld [vmem:[%s4] sm:$0x1]
        %419 = vset.pattern.permute.xlu0 0
        %420 = vperm.xlu0 %419, %v416
        %v421 = vpop.permute.xlu0 %420
        %v423 = vperm.slane %v417, 0
        %v424 = vmul.f32 %v421, %v423
        %v425 = vadd.f32 %v328, %v424
        %s426 = sld [smem:[#allocation8 + $0x1]]
        %v427 = vstv %s426
        %s428 = sld [smem:[#allocation6 + $0x1]]
        %s429 = smul.f32 %s333, %s428
        %v430 = vstv %s429
        %v431 = vmul.f32 %v430, %v325
        %v432 = vadd.f32 %v427, %v431
        %s433 = sld [smem:[#allocation6 + $0x81]]
        %s434 = smul.f32 %s340, %s433
        %v435 = vstv %s434
        %v436 = vmul.f32 %v435, %v325
        %438 = vrot.lane.b32.xlu0 %v436, 127
        %v439 = vpop.permute.xlu0 %438
        %v441 = vadd.f32 %v432, %v439
        %s442 = sld [smem:[#allocation6 + $0x101]]
        %s443 = smul.f32 %s351, %s442
        %v444 = vstv %s443
        %v445 = vmul.f32 %v444, %v325
        %447 = vrot.lane.b32.xlu0 %v445, 126
        %v448 = vpop.permute.xlu0 %447
        %v450 = vadd.f32 %v441, %v448
        %s451 = sld [smem:[#allocation6 + $0x181]]
        %s452 = smul.f32 %s362, %s451
        %v453 = vstv %s452
        %v454 = vmul.f32 %v453, %v325
        %456 = vrot.lane.b32.xlu0 %v454, 125
        %v457 = vpop.permute.xlu0 %456
        %v459 = vadd.f32 %v450, %v457
        %s460 = sld [smem:[#allocation6 + $0x201]]
        %s461 = smul.f32 %s373, %s460
        %v462 = vstv %s461
        %v463 = vmul.f32 %v462, %v325
        %465 = vrot.lane.b32.xlu0 %v463, 124
        %v466 = vpop.permute.xlu0 %465
        %v468 = vadd.f32 %v459, %v466
        %s469 = sld [smem:[#allocation6 + $0x281]]
        %s470 = smul.f32 %s384, %s469
        %v471 = vstv %s470
        %v472 = vmul.f32 %v471, %v325
        %474 = vrot.lane.b32.xlu0 %v472, 123
        %v475 = vpop.permute.xlu0 %474
        %v477 = vadd.f32 %v468, %v475
        %s478 = sld [smem:[#allocation6 + $0x301]]
        %s479 = smul.f32 %s395, %s478
        %v480 = vstv %s479
        %v481 = vmul.f32 %v480, %v325
        %483 = vrot.lane.b32.xlu0 %v481, 122
        %v484 = vpop.permute.xlu0 %483
        %v486 = vadd.f32 %v477, %v484
        %s487 = sld [smem:[#allocation6 + $0x381]]
        %s488 = smul.f32 %s406, %s487
        %v489 = vstv %s488
        %v490 = vmul.f32 %v489, %v325
        %492 = vrot.lane.b32.xlu0 %v490, 121
        %v493 = vpop.permute.xlu0 %492
        %v495 = vadd.f32 %v486, %v493
        %v496 = vmax.f32 %v495, 0.0
        %v497 = vld [vmem:[%s4 + $0x1] sm:$0x1]
        %499 = vset.pattern.permute.xlu0 0
        %500 = vperm.xlu0 %499, %v496
        %v501 = vpop.permute.xlu0 %500
        %v503 = vperm.slane %v497, 0
        %v504 = vmul.f32 %v501, %v503
        %v505 = vadd.f32 %v425, %v504
        %s506 = sld [smem:[#allocation8 + $0x2]]
        %v507 = vstv %s506
        %s508 = sld [smem:[#allocation6 + $0x2]]
        %s509 = smul.f32 %s333, %s508
        %v510 = vstv %s509
        %v511 = vmul.f32 %v510, %v325
        %v512 = vadd.f32 %v507, %v511
        %s513 = sld [smem:[#allocation6 + $0x82]]
        %s514 = smul.f32 %s340, %s513
        %v515 = vstv %s514
        %v516 = vmul.f32 %v515, %v325
        %518 = vrot.lane.b32.xlu0 %v516, 127
        %v519 = vpop.permute.xlu0 %518
        %v521 = vadd.f32 %v512, %v519
        %s522 = sld [smem:[#allocation6 + $0x102]]
        %s523 = smul.f32 %s351, %s522
        %v524 = vstv %s523
        %v525 = vmul.f32 %v524, %v325
        %527 = vrot.lane.b32.xlu0 %v525, 126
        %v528 = vpop.permute.xlu0 %527
        %v530 = vadd.f32 %v521, %v528
        %s531 = sld [smem:[#allocation6 + $0x182]]
        %s532 = smul.f32 %s362, %s531
        %v533 = vstv %s532
        %v534 = vmul.f32 %v533, %v325
        %536 = vrot.lane.b32.xlu0 %v534, 125
        %v537 = vpop.permute.xlu0 %536
        %v539 = vadd.f32 %v530, %v537
        %s540 = sld [smem:[#allocation6 + $0x202]]
        %s541 = smul.f32 %s373, %s540
        %v542 = vstv %s541
        %v543 = vmul.f32 %v542, %v325
        %545 = vrot.lane.b32.xlu0 %v543, 124
        %v546 = vpop.permute.xlu0 %545
        %v548 = vadd.f32 %v539, %v546
        %s549 = sld [smem:[#allocation6 + $0x282]]
        %s550 = smul.f32 %s384, %s549
        %v551 = vstv %s550
        %v552 = vmul.f32 %v551, %v325
        %554 = vrot.lane.b32.xlu0 %v552, 123
        %v555 = vpop.permute.xlu0 %554
        %v557 = vadd.f32 %v548, %v555
        %s558 = sld [smem:[#allocation6 + $0x302]]
        %s559 = smul.f32 %s395, %s558
        %v560 = vstv %s559
        %v561 = vmul.f32 %v560, %v325
        %563 = vrot.lane.b32.xlu0 %v561, 122
        %v564 = vpop.permute.xlu0 %563
        %v566 = vadd.f32 %v557, %v564
        %s567 = sld [smem:[#allocation6 + $0x382]]
        %s568 = smul.f32 %s406, %s567
        %v569 = vstv %s568
        %v570 = vmul.f32 %v569, %v325
        %572 = vrot.lane.b32.xlu0 %v570, 121
        %v573 = vpop.permute.xlu0 %572
        %v575 = vadd.f32 %v566, %v573
        %v576 = vmax.f32 %v575, 0.0
        %v577 = vld [vmem:[%s4 + $0x2] sm:$0x1]
        %579 = vset.pattern.permute.xlu0 0
        %580 = vperm.xlu0 %579, %v576
        %v581 = vpop.permute.xlu0 %580
        %v583 = vperm.slane %v577, 0
        %v584 = vmul.f32 %v581, %v583
        %v585 = vadd.f32 %v505, %v584
        %s586 = sld [smem:[#allocation8 + $0x3]]
        %v587 = vstv %s586
        %s588 = sld [smem:[#allocation6 + $0x3]]
        %s589 = smul.f32 %s333, %s588
        %v590 = vstv %s589
        %v591 = vmul.f32 %v590, %v325
        %v592 = vadd.f32 %v587, %v591
        %s593 = sld [smem:[#allocation6 + $0x83]]
        %s594 = smul.f32 %s340, %s593
        %v595 = vstv %s594
        %v596 = vmul.f32 %v595, %v325
        %598 = vrot.lane.b32.xlu0 %v596, 127
        %v599 = vpop.permute.xlu0 %598
        %v601 = vadd.f32 %v592, %v599
        %s602 = sld [smem:[#allocation6 + $0x103]]
        %s603 = smul.f32 %s351, %s602
        %v604 = vstv %s603
        %v605 = vmul.f32 %v604, %v325
        %607 = vrot.lane.b32.xlu0 %v605, 126
        %v608 = vpop.permute.xlu0 %607
        %v610 = vadd.f32 %v601, %v608
        %s611 = sld [smem:[#allocation6 + $0x183]]
        %s612 = smul.f32 %s362, %s611
        %v613 = vstv %s612
        %v614 = vmul.f32 %v613, %v325
        %616 = vrot.lane.b32.xlu0 %v614, 125
        %v617 = vpop.permute.xlu0 %616
        %v619 = vadd.f32 %v610, %v617
        %s620 = sld [smem:[#allocation6 + $0x203]]
        %s621 = smul.f32 %s373, %s620
        %v622 = vstv %s621
        %v623 = vmul.f32 %v622, %v325
        %625 = vrot.lane.b32.xlu0 %v623, 124
        %v626 = vpop.permute.xlu0 %625
        %v628 = vadd.f32 %v619, %v626
        %s629 = sld [smem:[#allocation6 + $0x283]]
        %s630 = smul.f32 %s384, %s629
        %v631 = vstv %s630
        %v632 = vmul.f32 %v631, %v325
        %634 = vrot.lane.b32.xlu0 %v632, 123
        %v635 = vpop.permute.xlu0 %634
        %v637 = vadd.f32 %v628, %v635
        %s638 = sld [smem:[#allocation6 + $0x303]]
        %s639 = smul.f32 %s395, %s638
        %v640 = vstv %s639
        %v641 = vmul.f32 %v640, %v325
        %643 = vrot.lane.b32.xlu0 %v641, 122
        %v644 = vpop.permute.xlu0 %643
        %v646 = vadd.f32 %v637, %v644
        %s647 = sld [smem:[#allocation6 + $0x383]]
        %s648 = smul.f32 %s406, %s647
        %v649 = vstv %s648
        %v650 = vmul.f32 %v649, %v325
        %652 = vrot.lane.b32.xlu0 %v650, 121
        %v653 = vpop.permute.xlu0 %652
        %v655 = vadd.f32 %v646, %v653
        %v656 = vmax.f32 %v655, 0.0
        %v657 = vld [vmem:[%s4 + $0x3] sm:$0x1]
        %659 = vset.pattern.permute.xlu0 0
        %660 = vperm.xlu0 %659, %v656
        %v661 = vpop.permute.xlu0 %660
        %v663 = vperm.slane %v657, 0
        %v664 = vmul.f32 %v661, %v663
        %v665 = vadd.f32 %v585, %v664
        %666 = vst [vmem:[%s324] sm:$0xff] %v665
        %s667 = sand.u32 %s180, 1
        %s668 = scalar_lea.sflag [#allocation4], %s667
        %s669 = sand.u32 %s180, 1
        %s670 = smul.addr %s669, 8
        %s671 = scalar_lea.vmem [#allocation10], %s670
        // Predicated region
        $region61: #{tpu_custom_call.1} parent=43 // pred_check
          %p672 = pneg %p190
        $region62: #{tpu_custom_call.1} parent=43 // pred_check_branch
          %674 = sbr.rel (%p672) target = $region64
        $region63: #{tpu_custom_call.1} parent=43 // pred_region
          %676 = vsyncadd %s668, 0
          %s677 = sadd.s32 %s30, %s29
          %s678 = smul.addr %s677, 8
          %s679 = scalar_lea.hbm %s6, %s678
          %s681 = sshll.u32 %s671, 4
          %s682 = int_to_ptr.vmem [resolvable:$true] %s681
          %s683 = sshll.u32 %s679, 4
          %s684 = int_to_ptr.hbm [resolvable:$true] %s683
          %686 = dma.vmem_to_hbm [thread:$0]  %s682, 128, %s684, %s668
        $region64: #{tpu_custom_call.1} parent=43 // pred_fallthru
          _
      $region44: #{tpu_custom_call.1} parent=5 // pred_fallthru
        _
      %p687 = scmp.le.s32.totalorder 2, %s20
      // Predicated region
      $region65: #{tpu_custom_call.1} parent=5 // pred_check
        %p688 = pneg %p687
      $region66: #{tpu_custom_call.1} parent=5 // pred_check_branch
        %690 = sbr.rel (%p688) target = $region68
      $region67: #{tpu_custom_call.1} parent=5 // pred_region
        %s691 = ssub.s32 %s20, 2
        // Predicated region
        $region69: #{tpu_custom_call.1} parent=67 // pred_check
          %p692 = pneg %p196
        $region70: #{tpu_custom_call.1} parent=67 // pred_check_branch
          %694 = sbr.rel (%p692) target = $region72
        $region71: #{tpu_custom_call.1} parent=67 // pred_region
          %s695 = sand.u32 %s181, 1
          %s696 = scalar_lea.sflag [#allocation4], %s695
          %s697 = sand.u32 %s181, 1
          %s698 = smul.addr %s697, 8
          %s699 = scalar_lea.vmem [#allocation10], %s698
          %701 = dma.done %s696, 128
        $region72: #{tpu_custom_call.1} parent=67 // pred_fallthru
          _
      $region68: #{tpu_custom_call.1} parent=5 // pred_fallthru
        _
    $region6: #{tpu_custom_call.1} parent=1 // loop_footer
      %s24 = sadd.s32 1, %s20
    $region7: #{tpu_custom_call.1} parent=1 // loop_footer_branch
      %19 = sbr.rel target = $region3
    $region8: #{tpu_custom_call.1} parent=1 // loop_exit
      _
    %702 = vsyncpa [#allocation3], 1
    %s703 = scalar_lea.sflag [#allocation3], 1
    %704 = vsyncpa %s703, 1
    %705 = vsyncpa [#allocation4], 1
    %s706 = scalar_lea.sflag [#allocation4], 1
    %707 = vsyncpa %s706, 1
    %708 = vsyncpa [#allocation5], 1
    %s709 = scalar_lea.sflag [#allocation5], 1
    %710 = vsyncpa %s709, 1
    %711 = vsyncpa [#allocation7], 1

</llo_original>
